<compile_context>
chip_gen: v7x
topology: tpu7x:2x2x1
jax: 0.10.0
libtpu: 0.0.40
codegen_flags: <defaults>
</compile_context>

<pallas_src>
import math

import jax
import jax.numpy as jnp
from jax.experimental import pallas as pl
from jax.experimental.pallas import tpu as pltpu


def _add_pe_kernel(x_ref, pe_ref, o_ref):
    # Lane-dense path:  x_ref (B, tL),  pe_ref (1, tL)    -> broadcast add over rows.
    # Fallback path:    x_ref (tB, S, D), pe_ref (1, S, D) -> broadcast add over batch.
    o_ref[...] = x_ref[...] + pe_ref[...]


def make_pe_table(in_dims: int, max_len: int) -> jnp.ndarray:
    """Deterministic sinusoidal positional-encoding buffer, shape (1, max_len, in_dims)."""
    position = jnp.arange(max_len, dtype=jnp.float32)[:, None]            # (max_len, 1)
    div_term = jnp.exp(
        jnp.arange(0, in_dims, 2, dtype=jnp.float32) * (-math.log(10000.0) / in_dims)
    )                                                                     # (ceil(D/2),)
    angles = position * div_term                                          # (max_len, ceil(D/2))
    pe = jnp.zeros((max_len, in_dims), dtype=jnp.float32)
    pe = pe.at[:, 0::2].set(jnp.sin(angles))
    pe = pe.at[:, 1::2].set(jnp.cos(angles)[:, : in_dims // 2])
    return pe[None]                                                       # (1, max_len, in_dims)


_PER_BUFFER_BUDGET = 2 * 1024 * 1024  # ~6 live buffers (2 in + 1 out, double-buffered) -> ~12 MiB


def _lane_tile(L: int, rows: int, itemsize: int) -> int:
    """Largest multiple-of-128 divisor of L whose (rows, tile) buffer stays under budget."""
    cap_elems = max(128, (_PER_BUFFER_BUDGET // max(rows * itemsize, 1)) // 128 * 128)
    n128 = L // 128
    best = 128
    for k in range(1, n128 + 1):
        t = k * 128
        if n128 % k == 0 and t <= cap_elems:
            best = t
    return best


def _batch_tile(B: int, slab_bytes: int) -> int:
    """Largest divisor of B whose (tB, S, D) buffer stays under budget (fallback path)."""
    best = 1
    for tB in range(1, B + 1):
        if B % tB == 0 and tB * slab_bytes <= _PER_BUFFER_BUDGET:
            best = tB
    return best


def positional_encoding(x: jnp.ndarray, pe: jnp.ndarray) -> jnp.ndarray:
    """x: (B, S, D);  pe: (1, max_len, D).  Returns x + pe[:, :S] (dropout p=0 => identity)."""
    B, S, D = x.shape
    pe_slice = pe[:, :S, :].astype(x.dtype)          # (1, S, D) -- cast once, outside kernel
    L = S * D
    itemsize = jnp.dtype(x.dtype).itemsize

    cost = pl.CostEstimate(
        flops=B * S * D,
        transcendentals=0,
        bytes_accessed=(2 * B * S * D + S * D) * itemsize,
    )

    if L % 128 == 0:
        # ---- Lane-dense path: collapse (S, D) into a multiple-of-128 lane axis. ----
        x2 = x.reshape(B, L)
        pe2 = pe_slice.reshape(1, L)
        tL = _lane_tile(L, B, itemsize)
        grid = (L // tL,)

        out2 = pl.pallas_call(
            _add_pe_kernel,
            out_shape=jax.ShapeDtypeStruct((B, L), x.dtype),
            grid_spec=pltpu.PrefetchScalarGridSpec(
                num_scalar_prefetch=0,
                grid=grid,
                in_specs=[
                    pl.BlockSpec((B, tL), lambda i: (0, i)),   # x rows, lane tile i
                    pl.BlockSpec((1, tL), lambda i: (0, i)),   # pe, broadcast over rows
                ],
                out_specs=pl.BlockSpec((B, tL), lambda i: (0, i)),
            ),
            compiler_params=pltpu.CompilerParams(
                dimension_semantics=("parallel",),
            ),
            cost_estimate=cost,
        )(x2, pe2)
        return out2.reshape(B, S, D)

    # ---- Fallback path (S*D not a multiple of 128): full (S, D) slab, tiled over batch. ----
    # Block's last two dims equal the full array dims, so the (8,128) rule is satisfied
    # for any D.  PE block index is constant, so it is fetched once per core; batch is
    # processed in the largest VMEM-safe tile to minimize per-grid-step overhead.
    tB = _batch_tile(B, L * itemsize)
    return pl.pallas_call(
        _add_pe_kernel,
        out_shape=jax.ShapeDtypeStruct((B, S, D), x.dtype),
        grid_spec=pltpu.PrefetchScalarGridSpec(
            num_scalar_prefetch=0,
            grid=(B // tB,),
            in_specs=[
                pl.BlockSpec((tB, S, D), lambda b: (b, 0, 0)),
                pl.BlockSpec((1, S, D), lambda b: (0, 0, 0)),
            ],
            out_specs=pl.BlockSpec((tB, S, D), lambda b: (b, 0, 0)),
        ),
        compiler_params=pltpu.CompilerParams(
            dimension_semantics=("parallel",),
        ),
        cost_estimate=cost,
    )(x, pe_slice)


if __name__ == "__main__":
    key = jax.random.PRNGKey(0)

    # --- Primary check: module config (in_dims=32, max_len=32), lane-dense path. ---
    in_dims, max_len = 32, 32
    B, S = 2, 8
    k0, k1 = jax.random.split(key)
    x = jax.random.normal(k0, (B, S, in_dims), dtype=jnp.float32)
    pe = make_pe_table(in_dims, max_len)

    out = positional_encoding(x, pe)
    out = jax.block_until_ready(out)

    ref = x + pe[:, :S, :]
    assert out.shape == (B, S, in_dims)
    assert jnp.allclose(out, ref, atol=1e-6), "mismatch vs reference (lane-dense path)"

    # --- Secondary check: shape exercising the 3-D fallback path (S*D % 128 != 0). ---
    in_dims2, S2 = 20, 5
    x2 = jax.random.normal(k1, (B, S2, in_dims2), dtype=jnp.float32)
    pe2 = make_pe_table(in_dims2, max_len)

    out2 = positional_encoding(x2, pe2)
    out2 = jax.block_until_ready(out2)

    ref2 = x2 + pe2[:, :S2, :]
    assert out2.shape == (B, S2, in_dims2)
    assert jnp.allclose(out2, ref2, atol=1e-6), "mismatch vs reference (fallback path)"

    print("KERNEL_OK")
</pallas_src>

<mosaic_0001>
module attributes {stable_mosaic.version = 11 : i64} {
  func.func @_add_pe_kernel(%arg0: i32, %arg1: memref<2x256xf32, #tpu.memory_space<vmem>>, %arg2: memref<1x256xf32, #tpu.memory_space<vmem>>, %arg3: memref<2x256xf32, #tpu.memory_space<vmem>>) attributes {dimension_semantics = [#tpu.dimension_semantics<parallel>], iteration_bounds = array<i64: 1>, scalar_prefetch = 0 : i64, scratch_operands = 0 : i64, tpu.core_type = #tpu.core_type<tc>, window_params = [{transform_indices = @transform_0, window_bounds = array<i64: 2, 256>}, {transform_indices = @transform_1, window_bounds = array<i64: 1, 256>}, {transform_indices = @transform_2, window_bounds = array<i64: 2, 256>}]} {
    %c0 = arith.constant 0 : index
    %c0_0 = arith.constant 0 : index
    %0 = vector.load %arg1[%c0, %c0_0] : memref<2x256xf32, #tpu.memory_space<vmem>>, vector<2x256xf32>
    %c0_1 = arith.constant 0 : index
    %c0_2 = arith.constant 0 : index
    %1 = vector.load %arg2[%c0_1, %c0_2] : memref<1x256xf32, #tpu.memory_space<vmem>>, vector<1x256xf32>
    %2 = vector.broadcast %1 : vector<1x256xf32> to vector<2x256xf32>
    %3 = arith.addf %0, %2 : vector<2x256xf32>
    %c0_3 = arith.constant 0 : index
    %c0_4 = arith.constant 0 : index
    %4 = vector.load %arg3[%c0_3, %c0_4] : memref<2x256xf32, #tpu.memory_space<vmem>>, vector<2x256xf32>
    tpu.vector_store %arg3[%c0_3, %c0_4], %3 {strides = array<i32>} : memref<2x256xf32, #tpu.memory_space<vmem>>, vector<2x256xf32>,
    return
  }
  func.func @transform_0(%arg0: i32) -> (i32, i32) {
    %c0_i32 = arith.constant 0 : i32
    %c0_i32_0 = arith.constant 0 : i32
    return %c0_i32, %arg0 : i32, i32
  }
  func.func @transform_1(%arg0: i32) -> (i32, i32) {
    %c0_i32 = arith.constant 0 : i32
    %c0_i32_0 = arith.constant 0 : i32
    return %c0_i32, %arg0 : i32, i32
  }
  func.func @transform_2(%arg0: i32) -> (i32, i32) {
    %c0_i32 = arith.constant 0 : i32
    %c0_i32_0 = arith.constant 0 : i32
    return %c0_i32, %arg0 : i32, i32
  }
}

</mosaic_0001>

<llo_original>
// kernel: tpu_custom_call.1
$region0: #{tpu_custom_call.1}
  #allocation0 [shape = 'u32[]', space=smem, size = 0x4, offset = 0x4, fixed_abs, tag = 'smem constant byte address 0x4 - core index']
  #allocation1 [shape = 'u32[144,128]{1,0:T(1,128)}', space=vmem, size = 0x12000, scoped, tag = 'internal scratch']
  %s0 = inlined_call_operand.hbm [shape: f32[2,256], index: 0, kind: input, shape index: {}]
  %s1 = inlined_call_operand.vmem [shape: f32[1,256], index: 1, kind: input, shape index: {}]
  %s2 = inlined_call_operand.hbm [shape: f32[2,256], index: 2, kind: output, shape index: {}]
  %s3 = sld [smem:[#allocation0]]
  $region22: #{tpu_custom_call.1} parent=0
    _
  %s5 = ssub.s32 1, %s3
  %s6 = scalar_select 0, %s5, %s3
  $region1: #{tpu_custom_call.1} parent=0
    #allocation2 [shape = 'u8[2048]{0}', space=vmem, size = 0x800, scoped, tag = 'input window, operand 0, single buffered']
    #allocation3 [shape = 's32[1]{0}', space=sflag, size = 0x4, scoped, tag = 'scoped memory for tpu_custom_call.1']
    #allocation4 [shape = 's32[1]{0}', space=sflag, size = 0x4, scoped, tag = 'scoped memory for tpu_custom_call.1']
    #allocation5 [shape = 'u8[2048]{0}', space=vmem, size = 0x800, scoped, tag = 'output window, operand 0, single buffered']
    %7 = vsyncpa [#allocation3], 0
    %8 = vsyncpa [#allocation4], 0
    // Predicated region
    $region2: #{tpu_custom_call.1} parent=1 // pred_check
      _
    $region3: #{tpu_custom_call.1} parent=1 // pred_check_branch
      %10 = sbr.rel (0) target = $region5
    $region4: #{tpu_custom_call.1} parent=1 // pred_region
      %s12 = ssub.s32 64, 64
      %13 = vsyncadd [#allocation3], %s12
      %s15 = sshll.u32 [#allocation2], 4
      %s16 = int_to_ptr.vmem [resolvable:$true] %s15
      %18 = dma.hbm_to_vmem [thread:$0]  %s0, 64, %s16, [#allocation3]
    $region5: #{tpu_custom_call.1} parent=1 // pred_fallthru
      _
    // Predicated region
    $region6: #{tpu_custom_call.1} parent=1 // pred_check
      _
    $region7: #{tpu_custom_call.1} parent=1 // pred_check_branch
      %20 = sbr.rel (0) target = $region9
    $region8: #{tpu_custom_call.1} parent=1 // pred_region
      _
    $region9: #{tpu_custom_call.1} parent=1 // pred_fallthru
      _
    // Predicated region
    $region10: #{tpu_custom_call.1} parent=1 // pred_check
      _
    $region11: #{tpu_custom_call.1} parent=1 // pred_check_branch
      %22 = sbr.rel (0) target = $region13
    $region12: #{tpu_custom_call.1} parent=1 // pred_region
      %23 = dma.done [#allocation3], 64
    $region13: #{tpu_custom_call.1} parent=1 // pred_fallthru
      _
    %v24 = vld [vmem:[#allocation2] sm:$0xf]
    %v25 = vld [vmem:[%s1] sm:$0x3]
    %v27 = vlaneseq
    %v28 = vshrl.u32 %v27, 7
    %v29 = vsub.s32 0, %v28
    %v30 = vrot.slane %v25, %v29
    %v31 = vlaneseq
    %v32 = vshrl.u32 %v31, 7
    %v33 = vsub.s32 1, %v32
    %v34 = vrot.slane %v25, %v33
    %v35 = vcombine.low %v30, %v34
    %v37 = vunpack.c.l.s4 1983009808
    %v38 = vunpack.c.0.s8 %v37
    %v39 = vlaneseq
    %v40 = vshrl.u32 %v39, 7
    %v41 = vsub.s32 %v38, %v40
    %v42 = vrot.slane %v35, %v41
    %v44 = vadd.f32 %v24, %v42
    %45 = vst [vmem:[#allocation5] sm:$0xf] %v44
    // Predicated region
    $region14: #{tpu_custom_call.1} parent=1 // pred_check
      _
    $region15: #{tpu_custom_call.1} parent=1 // pred_check_branch
      %47 = sbr.rel (0) target = $region17
    $region16: #{tpu_custom_call.1} parent=1 // pred_region
      %s49 = ssub.s32 64, 64
      %50 = vsyncadd [#allocation4], %s49
      %s52 = sshll.u32 [#allocation5], 4
      %s53 = int_to_ptr.vmem [resolvable:$true] %s52
      %55 = dma.vmem_to_hbm [thread:$0]  %s53, 64, %s2, [#allocation4]
    $region17: #{tpu_custom_call.1} parent=1 // pred_fallthru
      _
    // Predicated region
    $region18: #{tpu_custom_call.1} parent=1 // pred_check
      _
    $region19: #{tpu_custom_call.1} parent=1 // pred_check_branch
      %57 = sbr.rel (0) target = $region21
    $region20: #{tpu_custom_call.1} parent=1 // pred_region
      %58 = dma.done [#allocation4], 64
    $region21: #{tpu_custom_call.1} parent=1 // pred_fallthru
      _
    %59 = vsyncpa [#allocation3], 1
    %60 = vsyncpa [#allocation4], 1

</llo_original>
